<compile_context>
chip_gen: v7x
topology: tpu7x:2x2x1
jax: 0.10.0
libtpu: 0.0.40
codegen_flags: <defaults>
</compile_context>

<pallas_src>
import jax
import jax.numpy as jnp
import numpy as np
from jax import lax
from jax.experimental import pallas as pl
from jax.experimental.pallas import tpu as pltpu

EPS = 0.1  # FAConv default eps


# ------------------------------- kernels ---------------------------------- #

def lin1_kernel(x_ref, w_ref, out_ref, outb_ref):
    # x_ref: [TM, 1] f32 ; w_ref: [2, H] f32 (row 0 = lin1.weight.T, row 1 = bias)
    x0 = x_ref[...] * w_ref[0:1, :] + w_ref[1:2, :]
    out_ref[...] = x0
    outb_ref[...] = x0.astype(jnp.bfloat16)     # bf16 copy for the source side


def faconv_kernel(a_ref, xsb_ref, xd_ref, x0_ref, w_ref, out_ref, outb_ref):
    # a_ref  : [TM, TK] bf16  normalized adjacency block (dst tile x src chunk)
    # xsb_ref: [TK, H]  bf16  current node features, source chunk (pre-cast)
    # xd_ref : [TM, H]  f32   current node features, dst tile (resident over k)
    # x0_ref : [TM, H]  f32   lin1 output (residual), dst tile (resident over k)
    # w_ref  : [2, H]   f32   row 0 = att_l weight, row 1 = att_r weight
    # out_ref: [TM, H]  f32   accumulator / layer output
    # outb_ref:[TM, H]  bf16  bf16 copy of the output (next layer's source side)
    k = pl.program_id(1)

    @pl.when(k == 0)
    def _():
        out_ref[...] = EPS * x0_ref[...]          # init accumulator with residual

    xsb = xsb_ref[...]                                               # [TK, H] bf16

    # alpha_l in lane layout ([1, TK]) straight off the MXU.
    wl = w_ref[0:1, :].astype(jnp.bfloat16)
    al = lax.dot_general(wl, xsb, (((1,), (1,)), ((), ())),
                         preferred_element_type=jnp.float32)         # [1, TK]
    # alpha_r per destination node, sublane-resident [TM, 1].
    ar = jnp.sum(xd_ref[...] * w_ref[1:2, :], axis=-1, keepdims=True)  # [TM, 1]

    # bf16 mask chain: broadcast add + tanh + A*alpha, no f32 round trip.
    alpha = jnp.tanh(ar.astype(jnp.bfloat16) + al.astype(jnp.bfloat16))  # [TM, TK]
    msg = a_ref[...] * alpha                                             # bf16

    # MXU matmul: bf16 operands, f32 accumulation into the resident output.
    out_ref[...] += jnp.dot(msg, xsb, preferred_element_type=jnp.float32)

    @pl.when(k == pl.num_programs(1) - 1)
    def _():
        outb_ref[...] = out_ref[...].astype(jnp.bfloat16)


def pool_kernel(pool_ref, x_ref, out_ref):
    # global_mean_pool as a chunked [G, TK] @ [TK, H] accumulation.
    @pl.when(pl.program_id(0) == 0)
    def _():
        out_ref[...] = jnp.zeros_like(out_ref)
    out_ref[...] += jnp.dot(pool_ref[...], x_ref[...],
                            preferred_element_type=jnp.float32)


# ------------------------------ JAX glue ----------------------------------- #

def _build_dense_graph(edge_index, batch, num_nodes, num_graphs):
    """Plain-JAX glue: gcn_norm (with self loops) densified + mean-pool matrix."""
    src, dst = edge_index[0], edge_index[1]
    A = jnp.zeros((num_nodes, num_nodes), jnp.float32).at[dst, src].add(1.0)
    A = A + jnp.eye(num_nodes, dtype=jnp.float32)            # add_self_loops=True
    deg = A.sum(axis=1)                                      # degree incl. self loop
    dinv = jnp.where(deg > 0, deg ** -0.5, 0.0)
    A_norm = dinv[:, None] * A * dinv[None, :]               # d_i^-1/2 * w * d_j^-1/2

    onehot = (batch[None, :] == jnp.arange(num_graphs)[:, None]).astype(jnp.float32)
    pool = onehot / jnp.maximum(onehot.sum(axis=1, keepdims=True), 1.0)
    return A_norm, pool


def _round_up(n, m):
    return ((n + m - 1) // m) * m


def _vmem_budget_bytes():
    """Generation-aware VMEM budget (~3/4 of physical per-core VMEM)."""
    cap = 64 << 20                       # conservative default (v7x per-core)
    try:
        info = pltpu.get_tpu_info()
        cap = int(getattr(info, "vmem_capacity_bytes", cap))
    except Exception:
        pass
    return max(16 << 20, (cap * 3) // 4)


def cell_encoder_gene(x, edge_index, batch, params, num_graphs,
                      max_tm=256, max_tk=1024):
    N = x.shape[0]
    H = params["w1"].shape[1]
    A_norm, pool = _build_dense_graph(edge_index, batch, N, num_graphs)

    # --- tiling --------------------------------------------------------------
    # TM: power-of-two destination tile aiming for >= 4 dst tiles, capped.
    TM = 8
    while TM < max_tm and TM * 4 < N:
        TM *= 2
    # Guarantee >= 2 dst tiles so "parallel" engages both TCs on v7x; padded
    # nodes have zero adjacency rows/cols and zero pool weight, so they are
    # numerically inert.
    Np = _round_up(max(N, 2 * TM), TM)
    if Np > max_tk:
        TK = max_tk                          # multiple of 128 and of TM (both pow2)
        Np = _round_up(Np, TK)
    else:
        TK = Np                              # single source chunk (full dim is legal)
    pad = Np - N

    x_in = jnp.pad(x.astype(jnp.float32), ((0, pad), (0, 0)))
    A_bf16 = jnp.pad(A_norm, ((0, pad), (0, pad))).astype(jnp.bfloat16)
    pool_p = jnp.pad(pool, ((0, 0), (0, pad)))

    lin1_w = jnp.concatenate([params["w1"], params["b1"]], axis=0)          # [2, H]
    att_w = [jnp.concatenate([params[f"wl{k}"], params[f"wr{k}"]], axis=0)
             for k in (1, 2, 3)]                                            # [2, H] each

    n_i = Np // TM
    n_k = Np // TK

    # --- VMEM budget (includes the in-kernel alpha/msg temporaries) ----------
    est = (2 * TM * TK * 2            # A block, bf16, double-buffered
           + 2 * TK * H * 2           # xs block, bf16, double-buffered
           + 2 * 2 * TM * H * 4       # xd + x0 blocks (f32), double-buffered
           + 2 * TM * H * (4 + 2)     # out (f32) + out_b (bf16), double-buffered
           + 3 * TM * TK * 2          # alpha + msg bf16 temporaries (+ slack)
           + TM * TK * 4              # f32 headroom for mask-chain intermediates
           + (2 << 20))               # misc headroom
    vmem_limit = int(min(max(2 * est, 16 << 20), _vmem_budget_bytes()))

    cp_par = pltpu.CompilerParams(dimension_semantics=("parallel",),
                                  vmem_limit_bytes=vmem_limit)
    cp_fa = pltpu.CompilerParams(dimension_semantics=("parallel", "arbitrary"),
                                 vmem_limit_bytes=vmem_limit)
    cp_red = pltpu.CompilerParams(dimension_semantics=("arbitrary",),
                                  vmem_limit_bytes=vmem_limit)

    # ---- lin1: x0 = x @ W1.T + b1 (emits f32 + bf16 copies) ---------------- #
    x0_f, x0_b = pl.pallas_call(
        lin1_kernel,
        out_shape=(jax.ShapeDtypeStruct((Np, H), jnp.float32),
                   jax.ShapeDtypeStruct((Np, H), jnp.bfloat16)),
        grid=(n_i,),
        in_specs=[pl.BlockSpec((TM, 1), lambda i: (i, 0)),
                  pl.BlockSpec((2, H), lambda i: (0, 0))],
        out_specs=[pl.BlockSpec((TM, H), lambda i: (i, 0)),
                   pl.BlockSpec((TM, H), lambda i: (i, 0))],
        compiler_params=cp_par,
    )(x_in, lin1_w)

    # ---- FAConv x3 (dst-tile x src-chunk grid, bf16 mask chain) ------------- #
    faconv = pl.pallas_call(
        faconv_kernel,
        out_shape=(jax.ShapeDtypeStruct((Np, H), jnp.float32),
                   jax.ShapeDtypeStruct((Np, H), jnp.bfloat16)),
        grid=(n_i, n_k),
        in_specs=[pl.BlockSpec((TM, TK), lambda i, k: (i, k)),   # A block
                  pl.BlockSpec((TK, H), lambda i, k: (k, 0)),    # x (source, bf16)
                  pl.BlockSpec((TM, H), lambda i, k: (i, 0)),    # x (dst tile, f32)
                  pl.BlockSpec((TM, H), lambda i, k: (i, 0)),    # x0 residual tile
                  pl.BlockSpec((2, H), lambda i, k: (0, 0))],    # packed att_l/att_r
        out_specs=[pl.BlockSpec((TM, H), lambda i, k: (i, 0)),
                   pl.BlockSpec((TM, H), lambda i, k: (i, 0))],
        compiler_params=cp_fa,
    )

    x1_f, x1_b = faconv(A_bf16, x0_b, x0_f, x0_f, att_w[0])
    x2_f, x2_b = faconv(A_bf16, x1_b, x1_f, x0_f, att_w[1])
    x3_f, _ = faconv(A_bf16, x2_b, x2_f, x0_f, att_w[2])

    # ---- global_mean_pool (chunked accumulation over source tiles) ---------- #
    out = pl.pallas_call(
        pool_kernel,
        out_shape=jax.ShapeDtypeStruct((num_graphs, H), jnp.float32),
        grid=(n_k,),
        in_specs=[pl.BlockSpec((num_graphs, TK), lambda k: (0, k)),
                  pl.BlockSpec((TK, H), lambda k: (k, 0))],
        out_specs=pl.BlockSpec((num_graphs, H), lambda k: (0, 0)),
        compiler_params=cp_red,
    )(pool_p, x3_f)
    return out


def _reference(x, edge_index, batch, params, num_graphs):
    """Pure-JAX f32 reference mirroring the PyTorch module semantics."""
    N = x.shape[0]
    A_norm, pool = _build_dense_graph(edge_index, batch, N, num_graphs)
    x0 = x * params["w1"] + params["b1"]

    def fa(xc, wl, wr):
        al = jnp.sum(xc * wl, axis=-1)
        ar = jnp.sum(xc * wr, axis=-1, keepdims=True)
        alpha = jnp.tanh(ar + al[None, :])
        return (A_norm * alpha) @ xc + EPS * x0

    x1 = fa(x0, params["wl1"], params["wr1"])
    x2 = fa(x1, params["wl2"], params["wr2"])
    x3 = fa(x2, params["wl3"], params["wr3"])
    return pool @ x3


if __name__ == "__main__":
    hidden_dim = 32
    num_nodes = 8
    num_graphs = 2

    key = jax.random.PRNGKey(0)
    keys = jax.random.split(key, 10)

    # Deterministic synthetic parameters (shapes follow the module __init__).
    params = {
        "w1":  0.1 * jax.random.normal(keys[0], (1, hidden_dim), jnp.float32),  # lin1 weight.T
        "b1":  0.1 * jax.random.normal(keys[1], (1, hidden_dim), jnp.float32),  # lin1 bias
        "wl1": 0.1 * jax.random.normal(keys[2], (1, hidden_dim), jnp.float32),  # conv1.att_l
        "wr1": 0.1 * jax.random.normal(keys[3], (1, hidden_dim), jnp.float32),  # conv1.att_r
        "wl2": 0.1 * jax.random.normal(keys[4], (1, hidden_dim), jnp.float32),
        "wr2": 0.1 * jax.random.normal(keys[5], (1, hidden_dim), jnp.float32),
        "wl3": 0.1 * jax.random.normal(keys[6], (1, hidden_dim), jnp.float32),
        "wr3": 0.1 * jax.random.normal(keys[7], (1, hidden_dim), jnp.float32),
    }

    # Node features [N, 1] (the torch module: lin1 maps 1 -> hidden_dim).
    x = jax.random.normal(keys[8], (num_nodes, 1), jnp.float32)

    # Two graphs of 4 nodes each, undirected ring within each graph.
    ring = [(0, 1), (1, 2), (2, 3), (3, 0)]
    edges = []
    for g in range(num_graphs):
        off = 4 * g
        for a, b in ring:
            edges.append((a + off, b + off))
            edges.append((b + off, a + off))
    edge_index = jnp.array(np.array(edges, dtype=np.int32).T)        # [2, E]
    batch = jnp.array([0, 0, 0, 0, 1, 1, 1, 1], dtype=jnp.int32)     # [N]

    out = cell_encoder_gene(x, edge_index, batch, params, num_graphs)
    out = jax.block_until_ready(out)

    ref = _reference(x, edge_index, batch, params, num_graphs)
    assert out.shape == (num_graphs, hidden_dim)
    # Tolerance accounts for bf16 adjacency, bf16 source features and the bf16
    # alpha/mask chain (accumulation and residual stay f32).
    assert jnp.allclose(out, ref, rtol=5e-2, atol=5e-3), (out, ref)

    print("KERNEL_OK")
</pallas_src>

<mosaic_0001>
module attributes {stable_mosaic.version = 11 : i64} {
  func.func @lin1_kernel(%arg0: i32, %arg1: memref<8x1xf32, #tpu.memory_space<vmem>>, %arg2: memref<2x32xf32, #tpu.memory_space<vmem>>, %arg3: memref<8x32xf32, #tpu.memory_space<vmem>>, %arg4: memref<8x32xbf16, #tpu.memory_space<vmem>>) attributes {dimension_semantics = [#tpu.dimension_semantics<parallel>], iteration_bounds = array<i64: 2>, scalar_prefetch = 0 : i64, scratch_operands = 0 : i64, tpu.core_type = #tpu.core_type<tc>, window_params = [{transform_indices = @transform_0, window_bounds = array<i64: 8, 1>}, {pipeline_mode = #tpu.pipeline_mode<synchronous>, transform_indices = @transform_1, window_bounds = array<i64: 2, 32>}, {transform_indices = @transform_2, window_bounds = array<i64: 8, 32>}, {transform_indices = @transform_3, window_bounds = array<i64: 8, 32>}]} {
    %c0 = arith.constant 0 : index
    %c0_0 = arith.constant 0 : index
    %0 = vector.load %arg1[%c0, %c0_0] : memref<8x1xf32, #tpu.memory_space<vmem>>, vector<8x1xf32>
    %c0_1 = arith.constant 0 : index
    %c0_2 = arith.constant 0 : index
    %1 = vector.load %arg2[%c0_1, %c0_2] : memref<2x32xf32, #tpu.memory_space<vmem>>, vector<1x32xf32>
    %2 = vector.broadcast %0 : vector<8x1xf32> to vector<8x32xf32>
    %3 = vector.broadcast %1 : vector<1x32xf32> to vector<8x32xf32>
    %4 = arith.mulf %2, %3 : vector<8x32xf32>
    %c1 = arith.constant 1 : index
    %c0_3 = arith.constant 0 : index
    %5 = vector.load %arg2[%c1, %c0_3] : memref<2x32xf32, #tpu.memory_space<vmem>>, vector<1x32xf32>
    %6 = vector.broadcast %5 : vector<1x32xf32> to vector<8x32xf32>
    %7 = arith.addf %4, %6 : vector<8x32xf32>
    %c0_4 = arith.constant 0 : index
    %c0_5 = arith.constant 0 : index
    %8 = vector.load %arg3[%c0_4, %c0_5] : memref<8x32xf32, #tpu.memory_space<vmem>>, vector<8x32xf32>
    tpu.vector_store %arg3[%c0_4, %c0_5], %7 {strides = array<i32>} : memref<8x32xf32, #tpu.memory_space<vmem>>, vector<8x32xf32>,
    %9 = arith.truncf %7 : vector<8x32xf32> to vector<8x32xbf16>
    %c0_6 = arith.constant 0 : index
    %c0_7 = arith.constant 0 : index
    %10 = vector.load %arg4[%c0_6, %c0_7] : memref<8x32xbf16, #tpu.memory_space<vmem>>, vector<8x32xbf16>
    tpu.vector_store %arg4[%c0_6, %c0_7], %9 {strides = array<i32>} : memref<8x32xbf16, #tpu.memory_space<vmem>>, vector<8x32xbf16>,
    return
  }
  func.func @transform_0(%arg0: i32) -> (i32, i32) {
    %c0_i32 = arith.constant 0 : i32
    %c0_i32_0 = arith.constant 0 : i32
    return %arg0, %c0_i32 : i32, i32
  }
  func.func @transform_1(%arg0: i32) -> (i32, i32) {
    %c0_i32 = arith.constant 0 : i32
    %c0_i32_0 = arith.constant 0 : i32
    %c0_i32_1 = arith.constant 0 : i32
    return %c0_i32, %c0_i32_0 : i32, i32
  }
  func.func @transform_2(%arg0: i32) -> (i32, i32) {
    %c0_i32 = arith.constant 0 : i32
    %c0_i32_0 = arith.constant 0 : i32
    return %arg0, %c0_i32 : i32, i32
  }
  func.func @transform_3(%arg0: i32) -> (i32, i32) {
    %c0_i32 = arith.constant 0 : i32
    %c0_i32_0 = arith.constant 0 : i32
    return %arg0, %c0_i32 : i32, i32
  }
}

</mosaic_0001>

<llo_original>
// kernel: tpu_custom_call.1
$region0: #{tpu_custom_call.1}
  #allocation0 [shape = 'u32[]', space=smem, size = 0x4, offset = 0x4, fixed_abs, tag = 'smem constant byte address 0x4 - core index']
  #allocation1 [shape = 'u32[144,128]{1,0:T(1,128)}', space=vmem, size = 0x12000, scoped, tag = 'internal scratch']
  %s0 = inlined_call_operand.vmem [shape: f32[16,1], index: 0, kind: input, shape index: {}]
  %s1 = inlined_call_operand.vmem [shape: f32[2,32], index: 1, kind: input, shape index: {}]
  %s2 = inlined_call_operand.hbm [shape: f32[16,32], index: 2, kind: output, shape index: {0}]
  %s3 = inlined_call_operand.hbm [shape: bf16[16,32], index: 3, kind: output, shape index: {1}]
  %4 = xla_tuple %s2, %s3
  %s5 = sld [smem:[#allocation0]]
  $region49: #{tpu_custom_call.1} parent=0
    _
  %s7 = ssub.s32 1, %s5
  %s8 = scalar_select 0, %s7, %s5
  $region1: #{tpu_custom_call.1} parent=0
    #allocation2 [shape = 'u8[8192]{0}', space=vmem, size = 0x2000, scoped, tag = 'output window, operand 0']
    #allocation3 [shape = 's32[2]{0}', space=sflag, size = 0x8, scoped, tag = 'scoped memory for tpu_custom_call.1']
    #allocation4 [shape = 'u8[4096]{0}', space=vmem, size = 0x1000, scoped, tag = 'output window, operand 1']
    #allocation5 [shape = 's32[2]{0}', space=sflag, size = 0x8, scoped, tag = 'scoped memory for tpu_custom_call.1']
    %9 = vsyncpa [#allocation3], 0
    %s10 = scalar_lea.sflag [#allocation3], 1
    %11 = vsyncpa %s10, 0
    %12 = vsyncpa [#allocation5], 0
    %s13 = scalar_lea.sflag [#allocation5], 1
    %14 = vsyncpa %s13, 0
    loop: start=0, step=1, limit=4
    $region2: #{tpu_custom_call.1} parent=1 // loop_pre_header
      _
    $region3: #{tpu_custom_call.1} parent=1 // loop_header
      %s16 = sphi 0, %s20
      %p17 = scmp.ge.s32.totalorder %s16, 4
      %s26 = sphi 0, %s28
      %s29 = sphi 0, %s26
      %s30 = sphi 0, %s29
      %s46 = sphi 0, %s30
      %s50 = sphi 0, %s50
      %s52 = sphi 0, %s50
      %s53 = sphi 0, %s52
      %s67 = sphi 0, %s53
      %s73 = sphi 0, %s75
      %s76 = sphi 0, %s73
      %s77 = sphi 0, %s76
      %s93 = sphi 0, %s77
      %s99 = sphi 0, %s101
      %s102 = sphi 0, %s99
      %s103 = sphi 0, %s102
      %s119 = sphi 0, %s103
    $region4: #{tpu_custom_call.1} parent=1 // loop_header_branch
      %19 = sbr.rel (%p17) target = $region8
    $region5: #{tpu_custom_call.1} parent=1 // loop_body
      %s21 = ssub.s32 %s16, 1
      %s22 = ssub.s32 %s16, 2
      %s23 = sadd.s32 %s16, 1
      %s24 = ssub.s32 %s16, %s23
      %p25 = scmp.eq.s32.totalorder %s24, 0
      %s27 = sadd.s32 %s26, 1
      %s28 = scalar_select %p25, %s26, %s27
      %p31 = pneg %p25
      %p32 = scmp.eq.s32.totalorder %s16, 1
      %p33 = por %p31, %p32
      %p34 = scmp.ne.s32.totalorder %s26, %s29
      %p35 = scmp.eq.s32.totalorder %s16, 0
      %p36 = por %p34, %p35
      %p37 = scmp.ne.s32.totalorder %s26, %s29
      %p38 = scmp.eq.s32.totalorder %s21, 1
      %p39 = por %p37, %p38
      %p40 = scmp.ne.s32.totalorder %s29, %s30
      %p41 = scmp.eq.s32.totalorder %s21, 0
      %p42 = por %p40, %p41
      %p43 = scmp.ne.s32.totalorder %s29, %s30
      %p44 = scmp.eq.s32.totalorder %s22, 1
      %p45 = por %p43, %p44
      %p47 = scmp.ne.s32.totalorder %s30, %s46
      %p48 = scmp.eq.s32.totalorder %s22, 0
      %p49 = por %p47, %p48
      %s51 = sadd.s32 %s50, 1
      %p54 = scmp.eq.s32.totalorder %s16, 1
      %p55 = scmp.ne.s32.totalorder %s50, %s52
      %p56 = scmp.eq.s32.totalorder %s16, 0
      %p57 = por %p55, %p56
      %p58 = scmp.ne.s32.totalorder %s50, %s52
      %p59 = scmp.eq.s32.totalorder %s21, 1
      %p60 = por %p58, %p59
      %p61 = scmp.ne.s32.totalorder %s52, %s53
      %p62 = scmp.eq.s32.totalorder %s21, 0
      %p63 = por %p61, %p62
      %p64 = scmp.ne.s32.totalorder %s52, %s53
      %p65 = scmp.eq.s32.totalorder %s22, 1
      %p66 = por %p64, %p65
      %p68 = scmp.ne.s32.totalorder %s53, %s67
      %p69 = scmp.eq.s32.totalorder %s22, 0
      %p70 = por %p68, %p69
      %s71 = ssub.s32 %s16, %s23
      %p72 = scmp.eq.s32.totalorder %s71, 0
      %s74 = sadd.s32 %s73, 1
      %s75 = scalar_select %p72, %s73, %s74
      %p78 = pneg %p72
      %p79 = scmp.eq.s32.totalorder %s16, 1
      %p80 = por %p78, %p79
      %p81 = scmp.ne.s32.totalorder %s73, %s76
      %p82 = scmp.eq.s32.totalorder %s16, 0
      %p83 = por %p81, %p82
      %p84 = scmp.ne.s32.totalorder %s73, %s76
      %p85 = scmp.eq.s32.totalorder %s21, 1
      %p86 = por %p84, %p85
      %p87 = scmp.ne.s32.totalorder %s76, %s77
      %p88 = scmp.eq.s32.totalorder %s21, 0
      %p89 = por %p87, %p88
      %p90 = scmp.ne.s32.totalorder %s76, %s77
      %p91 = scmp.eq.s32.totalorder %s22, 1
      %p92 = por %p90, %p91
      %p94 = scmp.ne.s32.totalorder %s77, %s93
      %p95 = scmp.eq.s32.totalorder %s22, 0
      %p96 = por %p94, %p95
      %s97 = ssub.s32 %s16, %s23
      %p98 = scmp.eq.s32.totalorder %s97, 0
      %s100 = sadd.s32 %s99, 1
      %s101 = scalar_select %p98, %s99, %s100
      %p104 = pneg %p98
      %p105 = scmp.eq.s32.totalorder %s16, 1
      %p106 = por %p104, %p105
      %p107 = scmp.ne.s32.totalorder %s99, %s102
      %p108 = scmp.eq.s32.totalorder %s16, 0
      %p109 = por %p107, %p108
      %p110 = scmp.ne.s32.totalorder %s99, %s102
      %p111 = scmp.eq.s32.totalorder %s21, 1
      %p112 = por %p110, %p111
      %p113 = scmp.ne.s32.totalorder %s102, %s103
      %p114 = scmp.eq.s32.totalorder %s21, 0
      %p115 = por %p113, %p114
      %p116 = scmp.ne.s32.totalorder %s102, %s103
      %p117 = scmp.eq.s32.totalorder %s22, 1
      %p118 = por %p116, %p117
      %p120 = scmp.ne.s32.totalorder %s103, %s119
      %p121 = scmp.eq.s32.totalorder %s22, 0
      %p122 = por %p120, %p121
      %p123 = scmp.le.s32.totalorder 1, %s16
      %p124 = scmp.lt.s32.totalorder %s16, 3
      %p125 = pnand %p123, %p124
      %p126 = pneg %p125
      // Predicated region
      $region9: #{tpu_custom_call.1} parent=5 // pred_check
        _
      $region10: #{tpu_custom_call.1} parent=5 // pred_check_branch
        %128 = sbr.rel (%p125) target = $region12
      $region11: #{tpu_custom_call.1} parent=5 // pred_region
        %s129 = ssub.s32 %s16, 1
        // Predicated region
        $region13: #{tpu_custom_call.1} parent=11 // pred_check
          %p130 = pneg %p63
        $region14: #{tpu_custom_call.1} parent=11 // pred_check_branch
          %132 = sbr.rel (%p130) target = $region16
        $region15: #{tpu_custom_call.1} parent=11 // pred_region
          _
        $region16: #{tpu_custom_call.1} parent=11 // pred_fallthru
          _
      $region12: #{tpu_custom_call.1} parent=5 // pred_fallthru
        _
      %p133 = scmp.lt.s32.totalorder %s16, 2
      // Predicated region
      $region17: #{tpu_custom_call.1} parent=5 // pred_check
        %p134 = pneg %p133
      $region18: #{tpu_custom_call.1} parent=5 // pred_check_branch
        %136 = sbr.rel (%p134) target = $region20
      $region19: #{tpu_custom_call.1} parent=5 // pred_region
        // Predicated region
        $region21: #{tpu_custom_call.1} parent=19 // pred_check
          %p137 = pneg %p36
        $region22: #{tpu_custom_call.1} parent=19 // pred_check_branch
          %139 = sbr.rel (%p137) target = $region24
        $region23: #{tpu_custom_call.1} parent=19 // pred_region
          %p140 = scmp.lt.s32.totalorder %s16, 1
          %s141 = scalar_select %p140, %s16, 1
          %s142 = smul.addr %s141, 8
          %s143 = scalar_lea.vmem %s0, %s142
        $region24: #{tpu_custom_call.1} parent=19 // pred_fallthru
          _
      $region20: #{tpu_custom_call.1} parent=5 // pred_fallthru
        _
      %p144 = scmp.le.s32.totalorder 1, %s16
      %p145 = scmp.lt.s32.totalorder %s16, 3
      %p146 = pnand %p144, %p145
      %p147 = pneg %p146
      // Predicated region
      $region25: #{tpu_custom_call.1} parent=5 // pred_check
        _
      $region26: #{tpu_custom_call.1} parent=5 // pred_check_branch
        %149 = sbr.rel (%p146) target = $region28
      $region27: #{tpu_custom_call.1} parent=5 // pred_region
        %s150 = ssub.s32 %s16, 1
        %p151 = scmp.lt.s32.totalorder %s21, 1
        %s152 = scalar_select %p151, %s21, 1
        %s153 = smul.addr %s152, 8
        %s154 = scalar_lea.vmem %s0, %s153
        %p155 = pneg %p42
        %p156 = pneg %p39
        %p157 = pneg %p63
        %p158 = pneg %p60
        %p159 = pneg %p89
        %p160 = pneg %p86
        %s161 = sand.u32 %s76, 1
        %s162 = scalar_lea.sflag [#allocation3], %s161
        %s163 = sand.u32 %s76, 1
        %s164 = smul.addr %s163, 8
        %s165 = scalar_lea.vmem [#allocation2], %s164
        %p166 = pneg %p115
        %p167 = pneg %p112
        %s168 = sand.u32 %s102, 1
        %s169 = scalar_lea.sflag [#allocation5], %s168
        %s170 = sand.u32 %s102, 1
        %s171 = smul.addr %s170, 4
        %s172 = scalar_lea.vmem [#allocation4], %s171
        %p173 = scmp.lt.s32.totalorder %s21, 1
        %s174 = scalar_select %p173, %s21, 1
        %s175 = smul.addr %s174, 8
        %s176 = scalar_lea.vmem %s0, %s175
        %v177 = vld [vmem:[%s176] sm:$0xff]
        %v178 = vld [vmem:[%s1] sm:$0x1]
        %180 = vset.pattern.permute.xlu0 0
        %181 = vperm.xlu0 %180, %v177
        %v182 = vpop.permute.xlu0 %181
        %v184 = vlaneseq
        %v185 = vshrl.u32 %v184, 7
        %v186 = vsub.s32 0, %v185
        %v187 = vrot.slane %v178, %v186
        %v188 = vmul.f32 %v182, %v187
        %v189 = vld [vmem:[%s1 + $0x1] sm:$0x1]
        %v190 = vlaneseq
        %v191 = vshrl.u32 %v190, 7
        %v192 = vsub.s32 0, %v191
        %v193 = vrot.slane %v189, %v192
        %v194 = vadd.f32 %v188, %v193
        %vm195 = vcmask 261120
        %196 = vst.msk [vmem:[%s165] sm:$0xff] %vm195, %v194
        %v197 = vpack.c.bf16 %v194, %v194
        %vm198 = vcmask 257024
        %199 = vst.msk [vmem:[%s172] sm:$0xf] %vm198, %v197
        %s200 = sand.u32 %s76, 1
        %s201 = scalar_lea.sflag [#allocation3], %s200
        %s202 = sand.u32 %s76, 1
        %s203 = smul.addr %s202, 8
        %s204 = scalar_lea.vmem [#allocation2], %s203
        %s205 = sand.u32 %s102, 1
        %s206 = scalar_lea.sflag [#allocation5], %s205
        %s207 = sand.u32 %s102, 1
        %s208 = smul.addr %s207, 4
        %s209 = scalar_lea.vmem [#allocation4], %s208
        // Predicated region
        $region29: #{tpu_custom_call.1} parent=27 // pred_check
          %p210 = pneg %p86
        $region30: #{tpu_custom_call.1} parent=27 // pred_check_branch
          %212 = sbr.rel (%p210) target = $region32
        $region31: #{tpu_custom_call.1} parent=27 // pred_region
          %s214 = ssub.s32 128, 128
          %215 = vsyncadd %s201, %s214
          %s216 = smul.addr %s21, 128
          %s217 = scalar_lea.hbm %s2, %s216
          %s219 = sshll.u32 %s204, 4
          %s220 = int_to_ptr.vmem [resolvable:$true] %s219
          %222 = dma.vmem_to_hbm [thread:$0]  %s220, 128, %s217, %s201
        $region32: #{tpu_custom_call.1} parent=27 // pred_fallthru
          _
        // Predicated region
        $region33: #{tpu_custom_call.1} parent=27 // pred_check
          %p223 = pneg %p112
        $region34: #{tpu_custom_call.1} parent=27 // pred_check_branch
          %225 = sbr.rel (%p223) target = $region36
        $region35: #{tpu_custom_call.1} parent=27 // pred_region
          %s227 = ssub.s32 64, 64
          %228 = vsyncadd %s206, %s227
          %s229 = smul.addr %s21, 64
          %s230 = scalar_lea.hbm %s3, %s229
          %s232 = sshll.u32 %s209, 4
          %s233 = int_to_ptr.vmem [resolvable:$true] %s232
          %235 = dma.vmem_to_hbm [thread:$0]  %s233, 64, %s230, %s206
        $region36: #{tpu_custom_call.1} parent=27 // pred_fallthru
          _
      $region28: #{tpu_custom_call.1} parent=5 // pred_fallthru
        _
      %p236 = scmp.le.s32.totalorder 2, %s16
      // Predicated region
      $region37: #{tpu_custom_call.1} parent=5 // pred_check
        %p237 = pneg %p236
      $region38: #{tpu_custom_call.1} parent=5 // pred_check_branch
        %239 = sbr.rel (%p237) target = $region40
      $region39: #{tpu_custom_call.1} parent=5 // pred_region
        %s240 = ssub.s32 %s16, 2
        // Predicated region
        $region41: #{tpu_custom_call.1} parent=39 // pred_check
          %p241 = pneg %p92
        $region42: #{tpu_custom_call.1} parent=39 // pred_check_branch
          %243 = sbr.rel (%p241) target = $region44
        $region43: #{tpu_custom_call.1} parent=39 // pred_region
          %s244 = sand.u32 %s77, 1
          %s245 = scalar_lea.sflag [#allocation3], %s244
          %s246 = sand.u32 %s77, 1
          %s247 = smul.addr %s246, 8
          %s248 = scalar_lea.vmem [#allocation2], %s247
          %249 = dma.done %s245, 128
        $region44: #{tpu_custom_call.1} parent=39 // pred_fallthru
          _
        // Predicated region
        $region45: #{tpu_custom_call.1} parent=39 // pred_check
          %p250 = pneg %p118
        $region46: #{tpu_custom_call.1} parent=39 // pred_check_branch
          %252 = sbr.rel (%p250) target = $region48
        $region47: #{tpu_custom_call.1} parent=39 // pred_region
          %s253 = sand.u32 %s103, 1
          %s254 = scalar_lea.sflag [#allocation5], %s253
          %s255 = sand.u32 %s103, 1
          %s256 = smul.addr %s255, 4
          %s257 = scalar_lea.vmem [#allocation4], %s256
          %258 = dma.done %s254, 64
        $region48: #{tpu_custom_call.1} parent=39 // pred_fallthru
          _
      $region40: #{tpu_custom_call.1} parent=5 // pred_fallthru
        _
    $region6: #{tpu_custom_call.1} parent=1 // loop_footer
      %s20 = sadd.s32 1, %s16
    $region7: #{tpu_custom_call.1} parent=1 // loop_footer_branch
      %15 = sbr.rel target = $region3
    $region8: #{tpu_custom_call.1} parent=1 // loop_exit
      _
    %259 = vsyncpa [#allocation3], 1
    %s260 = scalar_lea.sflag [#allocation3], 1
    %261 = vsyncpa %s260, 1
    %262 = vsyncpa [#allocation5], 1
    %s263 = scalar_lea.sflag [#allocation5], 1
    %264 = vsyncpa %s263, 1

</llo_original>
